<compile_context>
chip_gen: v7x
topology: tpu7x:2x2x1
jax: 0.10.0
libtpu: 0.0.40
codegen_flags: <defaults>
</compile_context>

<pallas_src>
import jax
import jax.numpy as jnp
from jax import lax
from jax.experimental import pallas as pl
from jax.experimental.pallas import tpu as pltpu


def _round_up(n, m):
    return ((n + m - 1) // m) * m


def actor_critic_kernel(x_ref, p1_ref, p2_ref, out_ref):
    # Shapes (transposed layout, batch on lanes):
    #   x_ref  : [S,      TB]
    #   p1_ref : [2H,  S + 1]   = [W1^T | b1]
    #   p2_ref : [A+1, 2H + 1]  = [block-diag(W2a^T, W2c^T) | b2]
    #   out_ref: [A+1,    TB]   rows 0..A-1 = action probs, row A = state value
    s = x_ref.shape[0]
    h2 = p1_ref.shape[0]
    n_out = out_ref.shape[0]
    a = n_out - 1

    xv = x_ref[...]                                    # f32 or bf16 (MXU operand)

    # fused layer 1:  [W1a^T ; W1c^T] @ x  + b1  -> ReLU   (f32 accumulate)
    w1 = p1_ref[:, :s]
    b1 = p1_ref[:, s:s + 1].astype(jnp.float32)        # [2H, 1] broadcast over lanes
    h = jnp.dot(w1, xv, preferred_element_type=jnp.float32) + b1
    h = jnp.maximum(h, 0.0)
    h = h.astype(p2_ref.dtype)                         # bf16 MXU operand if requested

    # fused layer 2 (block diagonal):  rows 0..A-1 actor logits, row A critic value
    w2 = p2_ref[:, :h2]
    b2 = p2_ref[:, h2:h2 + 1].astype(jnp.float32)      # [A+1, 1]
    out = jnp.dot(w2, h, preferred_element_type=jnp.float32) + b2   # [A+1, TB] f32

    row = lax.broadcasted_iota(jnp.int32, out.shape, 0)
    if a == 2:
        # 2-way softmax == sigmoid of logit difference; sign-split -> no overflow.
        d = out[0:1, :] - out[1:2, :]                  # [1, TB] sublane-row op
        e = jnp.exp(-jnp.abs(d))
        p_big = 1.0 / (1.0 + e)                        # sigmoid(|d|)  in (0.5, 1]
        p0 = jnp.where(d >= 0, p_big, 1.0 - p_big)
        out_ref[...] = jnp.where(row == 0, p0,
                                 jnp.where(row == 1, 1.0 - p0, out))
    else:
        # general masked stable softmax over the logit rows; exact divide so
        # probabilities sum to 1 (PPO log-probs / entropy stay consistent).
        is_logit = row < a
        masked = jnp.where(is_logit, out, -jnp.inf)
        m = jnp.max(masked, axis=0, keepdims=True)
        e = jnp.exp(masked - m)                        # value row -> 0
        denom = jnp.sum(e, axis=0, keepdims=True)
        probs = e / denom
        out_ref[...] = jnp.where(is_logit, probs, out)


def pack_params(params):
    """One-time packing of the 8 nn.Linear tensors into 2 fused (transposed) buffers."""
    (w1a, b1a, w2a, b2a, w1c, b1c, w2c, b2c) = params
    hidden = w1a.shape[1]
    action_dim = w2a.shape[1]

    w1t = jnp.concatenate([w1a, w1c], axis=1).T                     # [2H, S]
    b1t = jnp.concatenate([b1a, b1c], axis=1).T                     # [2H, 1]
    # block-diagonal layer 2, transposed: [A+1, 2H]
    w2t = jnp.concatenate(
        [jnp.concatenate([w2a.T, jnp.zeros((action_dim, hidden), w2a.dtype)], axis=1),
         jnp.concatenate([jnp.zeros((1, hidden), w2c.dtype), w2c.T], axis=1)],
        axis=0)
    b2t = jnp.concatenate([b2a, b2c], axis=1).T                     # [A+1, 1]

    pack1 = jnp.concatenate([w1t, b1t], axis=1)                     # [2H, S+1]
    pack2 = jnp.concatenate([w2t, b2t], axis=1)                     # [A+1, 2H+1]
    return pack1, pack2, action_dim


def actor_critic_forward(x, pack1, pack2, action_dim, *,
                         batch_tile=512, compute_dtype=jnp.float32):
    """x: [B, state_dim] f32.  Returns (action_probs [B, A], state_value [B])."""
    B, S = x.shape
    n_out = action_dim + 1

    # Batch lives on the LANE axis: tile must be a multiple of 128.
    TB = min(batch_tile, _round_up(B, 128))
    TB = _round_up(TB, 128)
    B_pad = _round_up(B, TB)

    xt = x.T                                                        # [S, B] feature-major
    if B_pad != B:
        xt = jnp.pad(xt, ((0, 0), (0, B_pad - B)))
    xt = xt.astype(compute_dtype)
    p1 = pack1.astype(compute_dtype)
    p2 = pack2.astype(compute_dtype)

    out = pl.pallas_call(
        actor_critic_kernel,
        out_shape=jax.ShapeDtypeStruct((n_out, B_pad), jnp.float32),
        grid_spec=pltpu.PrefetchScalarGridSpec(
            num_scalar_prefetch=0,
            grid=(B_pad // TB,),
            in_specs=[
                pl.BlockSpec((S, TB), lambda i: (0, i)),      # x: dense lane-major tiles
                pl.BlockSpec(p1.shape, lambda i: (0, 0)),     # packed weights stay resident
                pl.BlockSpec(p2.shape, lambda i: (0, 0)),
            ],
            out_specs=pl.BlockSpec((n_out, TB), lambda i: (0, i)),  # lane-dense output slab
        ),
        compiler_params=pltpu.CompilerParams(
            dimension_semantics=("parallel",)),               # megacore / v7x 2 TCs
    )(xt, p1, p2)

    out = out[:, :B]                                          # drop padded batch columns
    return out[:action_dim, :].T, out[action_dim, :]          # probs [B,A], value [B]


def init_params(key, state_dim, action_dim, n_latent_var):
    """Deterministic synthetic init (shapes match the PyTorch module)."""
    ks = jax.random.split(key, 8)
    scale1 = 1.0 / jnp.sqrt(jnp.float32(state_dim))
    scale2 = 1.0 / jnp.sqrt(jnp.float32(n_latent_var))
    # stored as [in, out]  (transpose of torch's [out, in])
    w1a = jax.random.normal(ks[0], (state_dim, n_latent_var), jnp.float32) * scale1
    b1a = jax.random.normal(ks[1], (1, n_latent_var), jnp.float32) * scale1
    w2a = jax.random.normal(ks[2], (n_latent_var, action_dim), jnp.float32) * scale2
    b2a = jax.random.normal(ks[3], (1, action_dim), jnp.float32) * scale2
    w1c = jax.random.normal(ks[4], (state_dim, n_latent_var), jnp.float32) * scale1
    b1c = jax.random.normal(ks[5], (1, n_latent_var), jnp.float32) * scale1
    w2c = jax.random.normal(ks[6], (n_latent_var, 1), jnp.float32) * scale2
    b2c = jax.random.normal(ks[7], (1, 1), jnp.float32) * scale2
    return (w1a, b1a, w2a, b2a, w1c, b1c, w2c, b2c)


def reference_forward(x, params):
    (w1a, b1a, w2a, b2a, w1c, b1c, w2c, b2c) = params
    h_a = jnp.maximum(x @ w1a + b1a, 0.0)
    probs = jax.nn.softmax(h_a @ w2a + b2a, axis=-1)
    h_c = jnp.maximum(x @ w1c + b1c, 0.0)
    value = jnp.squeeze(h_c @ w2c + b2c, axis=-1)
    return probs, value


if __name__ == "__main__":
    # Blackjack-like sizes: state_dim=3 (player sum, dealer card, usable ace),
    # action_dim=2 (hit / stick), hidden n_latent_var=32, batch=8.
    B, STATE_DIM, ACTION_DIM, HIDDEN = 8, 3, 2, 32

    key = jax.random.PRNGKey(0)
    k_x, k_p, k_x2 = jax.random.split(key, 3)
    x = jax.random.normal(k_x, (B, STATE_DIM), jnp.float32)
    params = init_params(k_p, STATE_DIM, ACTION_DIM, HIDDEN)

    pack1, pack2, action_dim = pack_params(params)        # one-time weight packing

    # --- f32 path, small batch -------------------------------------------------
    probs, value = actor_critic_forward(x, pack1, pack2, action_dim)
    jax.block_until_ready((probs, value))

    ref_probs, ref_value = reference_forward(x, params)
    assert jnp.allclose(probs, ref_probs, atol=1e-5, rtol=1e-5)
    assert jnp.allclose(value, ref_value, atol=1e-5, rtol=1e-5)
    assert jnp.allclose(jnp.sum(probs, axis=-1), 1.0, atol=1e-5)

    # --- f32 path, bigger batch: exercises padding + a >1-step "parallel" grid --
    x2 = jax.random.normal(k_x2, (384, STATE_DIM), jnp.float32)
    probs2, value2 = actor_critic_forward(x2, pack1, pack2, action_dim, batch_tile=256)
    jax.block_until_ready((probs2, value2))
    ref_probs2, ref_value2 = reference_forward(x2, params)
    assert jnp.allclose(probs2, ref_probs2, atol=1e-5, rtol=1e-5)
    assert jnp.allclose(value2, ref_value2, atol=1e-5, rtol=1e-5)

    # --- bf16 input/weight path (v6e/v7x HBM-bandwidth win); f32 accum/epilogue -
    probs_bf, value_bf = actor_critic_forward(x, pack1, pack2, action_dim,
                                              compute_dtype=jnp.bfloat16)
    jax.block_until_ready((probs_bf, value_bf))
    assert jnp.max(jnp.abs(probs_bf - ref_probs)) < 5e-2
    assert jnp.max(jnp.abs(value_bf - ref_value)) < 1e-1
    assert jnp.allclose(jnp.sum(probs_bf, axis=-1), 1.0, atol=1e-5)

    # TODO(synk): Categorical sampling / log_prob / entropy (act/evaluate) are
    # trivially derived from `probs` outside the kernel and left in JAX.

    print("KERNEL_OK")
</pallas_src>

<mosaic_0001>
module attributes {stable_mosaic.version = 11 : i64} {
  func.func @actor_critic_kernel(%arg0: i32, %arg1: memref<3x128xf32, #tpu.memory_space<vmem>>, %arg2: memref<64x4xf32, #tpu.memory_space<vmem>>, %arg3: memref<3x65xf32, #tpu.memory_space<vmem>>, %arg4: memref<3x128xf32, #tpu.memory_space<vmem>>) attributes {dimension_semantics = [#tpu.dimension_semantics<parallel>], iteration_bounds = array<i64: 1>, scalar_prefetch = 0 : i64, scratch_operands = 0 : i64, tpu.core_type = #tpu.core_type<tc>, window_params = [{transform_indices = @transform_0, window_bounds = array<i64: 3, 128>}, {pipeline_mode = #tpu.pipeline_mode<synchronous>, transform_indices = @transform_1, window_bounds = array<i64: 64, 4>}, {pipeline_mode = #tpu.pipeline_mode<synchronous>, transform_indices = @transform_2, window_bounds = array<i64: 3, 65>}, {transform_indices = @transform_3, window_bounds = array<i64: 3, 128>}]} {
    %c0 = arith.constant 0 : index
    %c0_0 = arith.constant 0 : index
    %0 = vector.load %arg1[%c0, %c0_0] : memref<3x128xf32, #tpu.memory_space<vmem>>, vector<3x128xf32>
    %c0_1 = arith.constant 0 : index
    %c0_2 = arith.constant 0 : index
    %1 = vector.load %arg2[%c0_1, %c0_2] : memref<64x4xf32, #tpu.memory_space<vmem>>, vector<64x3xf32>
    %c0_3 = arith.constant 0 : index
    %c3 = arith.constant 3 : index
    %2 = vector.load %arg2[%c0_3, %c3] : memref<64x4xf32, #tpu.memory_space<vmem>>, vector<64x1xf32>
    %cst = arith.constant dense<0.000000e+00> : vector<64x128xf32>
    %3 = tpu.matmul %1, %0, %cst {dimension_numbers = #tpu.dot_dimension_numbers<[1], [0], [0], [1], [0, 0, 1, 1], [], []>} : vector<64x3xf32>, vector<3x128xf32>, vector<64x128xf32> -> vector<64x128xf32>
    %4 = vector.broadcast %2 : vector<64x1xf32> to vector<64x128xf32>
    %5 = arith.addf %3, %4 : vector<64x128xf32>
    %cst_4 = arith.constant 0.000000e+00 : f32
    %6 = vector.broadcast %cst_4 : f32 to vector<64x128xf32>
    %7 = arith.maximumf %5, %6 : vector<64x128xf32>
    %c0_5 = arith.constant 0 : index
    %c0_6 = arith.constant 0 : index
    %8 = vector.load %arg3[%c0_5, %c0_6] : memref<3x65xf32, #tpu.memory_space<vmem>>, vector<3x64xf32>
    %c0_7 = arith.constant 0 : index
    %c64 = arith.constant 64 : index
    %9 = vector.load %arg3[%c0_7, %c64] : memref<3x65xf32, #tpu.memory_space<vmem>>, vector<3x1xf32>
    %cst_8 = arith.constant dense<0.000000e+00> : vector<3x128xf32>
    %10 = tpu.matmul %8, %7, %cst_8 {dimension_numbers = #tpu.dot_dimension_numbers<[1], [0], [0], [1], [0, 0, 1, 1], [], []>} : vector<3x64xf32>, vector<64x128xf32>, vector<3x128xf32> -> vector<3x128xf32>
    %11 = vector.broadcast %9 : vector<3x1xf32> to vector<3x128xf32>
    %12 = arith.addf %10, %11 : vector<3x128xf32>
    %13 = tpu.iota {dimensions = array<i32: 0>} : vector<3x128xi32>
    %14 = vector.extract_strided_slice %12 {offsets = [0, 0], sizes = [1, 128], strides = [1, 1]} : vector<3x128xf32> to vector<1x128xf32>
    %15 = vector.extract_strided_slice %12 {offsets = [1, 0], sizes = [1, 128], strides = [1, 1]} : vector<3x128xf32> to vector<1x128xf32>
    %16 = arith.subf %14, %15 : vector<1x128xf32>
    %17 = math.absf %16 : vector<1x128xf32>
    %cst_9 = arith.constant 0.000000e+00 : f32
    %18 = vector.broadcast %cst_9 : f32 to vector<1x128xf32>
    %19 = arith.subf %18, %17 : vector<1x128xf32>
    %20 = math.exp %19 : vector<1x128xf32>
    %cst_10 = arith.constant 1.000000e+00 : f32
    %21 = vector.broadcast %cst_10 : f32 to vector<1x128xf32>
    %22 = arith.addf %21, %20 : vector<1x128xf32>
    %cst_11 = arith.constant 1.000000e+00 : f32
    %23 = vector.broadcast %cst_11 : f32 to vector<1x128xf32>
    %24 = arith.divf %23, %22 : vector<1x128xf32>
    %cst_12 = arith.constant 0.000000e+00 : f32
    %25 = vector.broadcast %cst_12 : f32 to vector<1x128xf32>
    %26 = arith.cmpf oge, %16, %25 : vector<1x128xf32>
    %cst_13 = arith.constant 1.000000e+00 : f32
    %27 = vector.broadcast %cst_13 : f32 to vector<1x128xf32>
    %28 = arith.subf %27, %24 : vector<1x128xf32>
    %29 = arith.select %26, %24, %28 : vector<1x128xi1>, vector<1x128xf32>
    %c0_i32 = arith.constant 0 : i32
    %30 = vector.broadcast %c0_i32 : i32 to vector<3x128xi32>
    %31 = arith.cmpi eq, %13, %30 : vector<3x128xi32>
    %c1_i32 = arith.constant 1 : i32
    %32 = vector.broadcast %c1_i32 : i32 to vector<3x128xi32>
    %33 = arith.cmpi eq, %13, %32 : vector<3x128xi32>
    %cst_14 = arith.constant 1.000000e+00 : f32
    %34 = vector.broadcast %cst_14 : f32 to vector<1x128xf32>
    %35 = arith.subf %34, %29 : vector<1x128xf32>
    %36 = vector.shape_cast %35 : vector<1x128xf32> to vector<1x128xf32>
    %37 = vector.broadcast %36 : vector<1x128xf32> to vector<3x128xf32>
    %38 = arith.select %33, %37, %12 : vector<3x128xi1>, vector<3x128xf32>
    %39 = vector.shape_cast %29 : vector<1x128xf32> to vector<1x128xf32>
    %40 = vector.broadcast %39 : vector<1x128xf32> to vector<3x128xf32>
    %41 = arith.select %31, %40, %38 : vector<3x128xi1>, vector<3x128xf32>
    %c0_15 = arith.constant 0 : index
    %c0_16 = arith.constant 0 : index
    %42 = vector.load %arg4[%c0_15, %c0_16] : memref<3x128xf32, #tpu.memory_space<vmem>>, vector<3x128xf32>
    tpu.vector_store %arg4[%c0_15, %c0_16], %41 {strides = array<i32>} : memref<3x128xf32, #tpu.memory_space<vmem>>, vector<3x128xf32>,
    return
  }
  func.func @transform_0(%arg0: i32) -> (i32, i32) {
    %c0_i32 = arith.constant 0 : i32
    %c0_i32_0 = arith.constant 0 : i32
    return %c0_i32, %arg0 : i32, i32
  }
  func.func @transform_1(%arg0: i32) -> (i32, i32) {
    %c0_i32 = arith.constant 0 : i32
    %c0_i32_0 = arith.constant 0 : i32
    %c0_i32_1 = arith.constant 0 : i32
    return %c0_i32, %c0_i32_0 : i32, i32
  }
  func.func @transform_2(%arg0: i32) -> (i32, i32) {
    %c0_i32 = arith.constant 0 : i32
    %c0_i32_0 = arith.constant 0 : i32
    %c0_i32_1 = arith.constant 0 : i32
    return %c0_i32, %c0_i32_0 : i32, i32
  }
  func.func @transform_3(%arg0: i32) -> (i32, i32) {
    %c0_i32 = arith.constant 0 : i32
    %c0_i32_0 = arith.constant 0 : i32
    return %c0_i32, %arg0 : i32, i32
  }
}

</mosaic_0001>

<llo_original>
// kernel: tpu_custom_call.1
$region0: #{tpu_custom_call.1}
  #allocation0 [shape = 'u32[]', space=smem, size = 0x4, offset = 0x4, fixed_abs, tag = 'smem constant byte address 0x4 - core index']
  #allocation1 [shape = 'u32[144,128]{1,0:T(1,128)}', space=vmem, size = 0x12000, scoped, tag = 'internal scratch']
  %s0 = inlined_call_operand.vmem [shape: f32[3,128], index: 0, kind: input, shape index: {}]
  %s1 = inlined_call_operand.vmem [shape: f32[64,4], index: 1, kind: input, shape index: {}]
  %s2 = inlined_call_operand.vmem [shape: f32[3,65], index: 2, kind: input, shape index: {}]
  %s3 = inlined_call_operand.hbm [shape: f32[3,128], index: 3, kind: output, shape index: {}]
  %s4 = sld [smem:[#allocation0]]
  $region22: #{tpu_custom_call.1} parent=0
    _
  %s6 = ssub.s32 1, %s4
  %s7 = scalar_select 0, %s6, %s4
  $region1: #{tpu_custom_call.1} parent=0
    #allocation2 [shape = 'u8[2048]{0}', space=vmem, size = 0x800, scoped, tag = 'output window, operand 0, single buffered']
    #allocation3 [shape = 's32[1]{0}', space=sflag, size = 0x4, scoped, tag = 'scoped memory for tpu_custom_call.1']
    %8 = vsyncpa [#allocation3], 0
    // Predicated region
    $region2: #{tpu_custom_call.1} parent=1 // pred_check
      _
    $region3: #{tpu_custom_call.1} parent=1 // pred_check_branch
      %10 = sbr.rel (0) target = $region5
    $region4: #{tpu_custom_call.1} parent=1 // pred_region
      _
    $region5: #{tpu_custom_call.1} parent=1 // pred_fallthru
      _
    // Predicated region
    $region6: #{tpu_custom_call.1} parent=1 // pred_check
      _
    $region7: #{tpu_custom_call.1} parent=1 // pred_check_branch
      %12 = sbr.rel (0) target = $region9
    $region8: #{tpu_custom_call.1} parent=1 // pred_region
      _
    $region9: #{tpu_custom_call.1} parent=1 // pred_fallthru
      _
    // Predicated region
    $region10: #{tpu_custom_call.1} parent=1 // pred_check
      _
    $region11: #{tpu_custom_call.1} parent=1 // pred_check_branch
      %14 = sbr.rel (0) target = $region13
    $region12: #{tpu_custom_call.1} parent=1 // pred_region
      _
    $region13: #{tpu_custom_call.1} parent=1 // pred_fallthru
      _
    %v15 = vld [vmem:[%s0] sm:$0x7]
    %v16 = vld [vmem:[%s1] sm:$0xff]
    %v17 = vld [vmem:[%s1 + $0x8] sm:$0xff]
    %v18 = vld [vmem:[%s1 + $0x10] sm:$0xff]
    %v19 = vld [vmem:[%s1 + $0x18] sm:$0xff]
    %v20 = vld [vmem:[%s1 + $0x20] sm:$0xff]
    %v21 = vld [vmem:[%s1 + $0x28] sm:$0xff]
    %v22 = vld [vmem:[%s1 + $0x30] sm:$0xff]
    %v23 = vld [vmem:[%s1 + $0x38] sm:$0xff]
    %25 = vset.pattern.permute.xlu0 3
    %26 = vperm.xlu0 %25, %v16
    %v27 = vpop.permute.xlu0 %26
    %30 = vset.pattern.permute.xlu0 3
    %31 = vperm.xlu0 %30, %v17
    %v32 = vpop.permute.xlu0 %31
    %35 = vset.pattern.permute.xlu0 3
    %36 = vperm.xlu0 %35, %v18
    %v37 = vpop.permute.xlu0 %36
    %40 = vset.pattern.permute.xlu0 3
    %41 = vperm.xlu0 %40, %v19
    %v42 = vpop.permute.xlu0 %41
    %45 = vset.pattern.permute.xlu0 3
    %46 = vperm.xlu0 %45, %v20
    %v47 = vpop.permute.xlu0 %46
    %50 = vset.pattern.permute.xlu0 3
    %51 = vperm.xlu0 %50, %v21
    %v52 = vpop.permute.xlu0 %51
    %55 = vset.pattern.permute.xlu0 3
    %56 = vperm.xlu0 %55, %v22
    %v57 = vpop.permute.xlu0 %56
    %60 = vset.pattern.permute.xlu0 3
    %61 = vperm.xlu0 %60, %v23
    %v62 = vpop.permute.xlu0 %61
    %vm64 = vcmask 23552
    %v65 = vsel %vm64, %v16, 0
    %v67 = vsel %vm64, %v17, 0
    %v69 = vsel %vm64, %v18, 0
    %v71 = vsel %vm64, %v19, 0
    %v73 = vsel %vm64, %v20, 0
    %v75 = vsel %vm64, %v21, 0
    %v77 = vsel %vm64, %v22, 0
    %v79 = vsel %vm64, %v23, 0
    %vm81 = vcmask 1042432
    %v83 = vsel %vm81, %v15, 0
    %85 = vmatprep.subr.mxu0 0.0
    %86 = vmatpush1.msra.mxu0 %v83
    %87 = vmatprep.subr.mxu0 0.0
    %88 = vmatpush1.msra.mxu0 0.0
    %89 = vmatprep.subr.mxu0 0.0
    %90 = vmatpush1.msra.mxu0 0.0
    %91 = vmatprep.subr.mxu0 0.0
    %92 = vmatpush1.msra.mxu0 0.0
    %93 = vmatprep.subr.mxu0 0.0
    %94 = vmatpush1.msra.mxu0 0.0
    %95 = vmatprep.subr.mxu0 0.0
    %96 = vmatpush1.msra.mxu0 0.0
    %97 = vmatprep.subr.mxu0 0.0
    %98 = vmatpush1.msra.mxu0 0.0
    %99 = vmatprep.subr.mxu0 0.0
    %100 = vmatpush1.msra.mxu0 0.0
    %101 = vmatprep.subr.mxu0 0.0
    %102 = vmatpush1.msra.mxu0 0.0
    %103 = vmatprep.subr.mxu0 0.0
    %104 = vmatpush1.msra.mxu0 0.0
    %105 = vmatprep.subr.mxu0 0.0
    %106 = vmatpush1.msra.mxu0 0.0
    %107 = vmatprep.subr.mxu0 0.0
    %108 = vmatpush1.msra.mxu0 0.0
    %109 = vmatprep.subr.mxu0 0.0
    %110 = vmatpush1.msra.mxu0 0.0
    %111 = vmatprep.subr.mxu0 0.0
    %112 = vmatpush1.msra.mxu0 0.0
    %113 = vmatprep.subr.mxu0 0.0
    %114 = vmatpush1.msra.mxu0 0.0
    %115 = vmatprep.subr.mxu0 0.0
    %116 = vmatpush1.msra.mxu0 0.0
    %117 = vmatprep.subr.mxu0 0.0
    %118 = vmatpush1.msra.mxu0 0.0
    %119 = vmatprep.subr.mxu0 0.0
    %120 = vmatpush1.msra.mxu0 0.0
    %121 = vmatprep.subr.mxu0 0.0
    %122 = vmatpush1.msra.mxu0 0.0
    %123 = vmatprep.subr.mxu0 0.0
    %124 = vmatpush1.msra.mxu0 0.0
    %125 = vmatprep.subr.mxu0 0.0
    %126 = vmatpush1.msra.mxu0 0.0
    %127 = vmatprep.subr.mxu0 0.0
    %128 = vmatpush1.msra.mxu0 0.0
    %129 = vmatprep.subr.mxu0 0.0
    %130 = vmatpush1.msra.mxu0 0.0
    %131 = vmatprep.subr.mxu0 0.0
    %132 = vmatpush1.msra.mxu0 0.0
    %133 = vmatprep.subr.mxu0 0.0
    %134 = vmatpush1.msra.mxu0 0.0
    %135 = vmatprep.subr.mxu0 0.0
    %136 = vmatpush1.msra.mxu0 0.0
    %137 = vmatprep.subr.mxu0 0.0
    %138 = vmatpush1.msra.mxu0 0.0
    %139 = vmatprep.subr.mxu0 0.0
    %140 = vmatpush1.msra.mxu0 0.0
    %141 = vmatprep.subr.mxu0 0.0
    %142 = vmatpush1.msra.mxu0 0.0
    %143 = vmatprep.subr.mxu0 0.0
    %144 = vmatpush1.msra.mxu0 0.0
    %145 = vmatprep.subr.mxu0 0.0
    %146 = vmatpush1.msra.mxu0 0.0
    %147 = vmatprep.subr.mxu0 0.0
    %148 = vmatpush1.msra.mxu0 0.0
    %149 = vmatprep.mubr.f32.mxu0 0.0
    %150 = vmatmul.mubr.f32.gmra.mrb[0].mxu0 %v65
    %v151 = vpop.f32.mrb[0].mxu0
    %v152 = vadd.f32 %v27, %v151
    %v153 = vpop.f32.mrb[0].mxu0
    %154 = vmatprep.mubr.f32.mxu0 0.0
    %155 = vmatmul.mubr.f32.gmra.mrb[0].mxu0 %v67
    %v156 = vpop.f32.mrb[0].mxu0
    %v157 = vadd.f32 %v32, %v156
    %v158 = vpop.f32.mrb[0].mxu0
    %159 = vmatprep.mubr.f32.mxu0 0.0
    %160 = vmatmul.mubr.f32.gmra.mrb[0].mxu0 %v69
    %v161 = vpop.f32.mrb[0].mxu0
    %v162 = vadd.f32 %v37, %v161
    %v163 = vpop.f32.mrb[0].mxu0
    %164 = vmatprep.mubr.f32.mxu0 0.0
    %165 = vmatmul.mubr.f32.gmra.mrb[0].mxu0 %v71
    %v166 = vpop.f32.mrb[0].mxu0
    %v167 = vadd.f32 %v42, %v166
    %v168 = vpop.f32.mrb[0].mxu0
    %169 = vmatprep.mubr.f32.mxu0 0.0
    %170 = vmatmul.mubr.f32.gmra.mrb[0].mxu0 %v73
    %v171 = vpop.f32.mrb[0].mxu0
    %v172 = vadd.f32 %v47, %v171
    %v173 = vpop.f32.mrb[0].mxu0
    %174 = vmatprep.mubr.f32.mxu0 0.0
    %175 = vmatmul.mubr.f32.gmra.mrb[0].mxu0 %v75
    %v176 = vpop.f32.mrb[0].mxu0
    %v177 = vadd.f32 %v52, %v176
    %v178 = vpop.f32.mrb[0].mxu0
    %179 = vmatprep.mubr.f32.mxu0 0.0
    %180 = vmatmul.mubr.f32.gmra.mrb[0].mxu0 %v77
    %v181 = vpop.f32.mrb[0].mxu0
    %v182 = vadd.f32 %v57, %v181
    %v183 = vpop.f32.mrb[0].mxu0
    %184 = vmatprep.mubr.f32.mxu0 0.0
    %185 = vmatmul.mubr.f32.gmra.mrb[0].mxu0 %v79
    %v186 = vpop.f32.mrb[0].mxu0
    %v187 = vadd.f32 %v62, %v186
    %v188 = vpop.f32.mrb[0].mxu0
    %189 = vdwg.mxu0
    %v190 = vmax.f32 %v152, 0.0
    %v191 = vmax.f32 %v157, 0.0
    %v192 = vmax.f32 %v162, 0.0
    %v193 = vmax.f32 %v167, 0.0
    %v194 = vmax.f32 %v172, 0.0
    %v195 = vmax.f32 %v177, 0.0
    %v196 = vmax.f32 %v182, 0.0
    %v197 = vmax.f32 %v187, 0.0
    %v198 = vld [vmem:[%s2] sm:$0x7]
    %200 = vset.pattern.permute.xlu0 64
    %201 = vperm.xlu0 %200, %v198
    %v202 = vpop.permute.xlu0 %201
    %vm204 = vcmask 523264
    %v205 = vsel %vm204, %v198, 0
    %207 = vmatprep.subr.mxu0 0.0
    %208 = vmatpush1.msra.mxu0 %v190
    %209 = vmatprep.subr.mxu0 0.0
    %210 = vmatpush1.msra.mxu0 %v191
    %211 = vmatprep.subr.mxu0 0.0
    %212 = vmatpush1.msra.mxu0 %v192
    %213 = vmatprep.subr.mxu0 0.0
    %214 = vmatpush1.msra.mxu0 %v193
    %215 = vmatprep.subr.mxu0 0.0
    %216 = vmatpush1.msra.mxu0 %v194
    %217 = vmatprep.subr.mxu0 0.0
    %218 = vmatpush1.msra.mxu0 %v195
    %219 = vmatprep.subr.mxu0 0.0
    %220 = vmatpush1.msra.mxu0 %v196
    %221 = vmatprep.subr.mxu0 0.0
    %222 = vmatpush1.msra.mxu0 %v197
    %223 = vmatprep.subr.mxu0 0.0
    %224 = vmatpush1.msra.mxu0 0.0
    %225 = vmatprep.subr.mxu0 0.0
    %226 = vmatpush1.msra.mxu0 0.0
    %227 = vmatprep.subr.mxu0 0.0
    %228 = vmatpush1.msra.mxu0 0.0
    %229 = vmatprep.subr.mxu0 0.0
    %230 = vmatpush1.msra.mxu0 0.0
    %231 = vmatprep.subr.mxu0 0.0
    %232 = vmatpush1.msra.mxu0 0.0
    %233 = vmatprep.subr.mxu0 0.0
    %234 = vmatpush1.msra.mxu0 0.0
    %235 = vmatprep.subr.mxu0 0.0
    %236 = vmatpush1.msra.mxu0 0.0
    %237 = vmatprep.subr.mxu0 0.0
    %238 = vmatpush1.msra.mxu0 0.0
    %239 = vmatprep.subr.mxu0 0.0
    %240 = vmatpush1.msra.mxu0 0.0
    %241 = vmatprep.subr.mxu0 0.0
    %242 = vmatpush1.msra.mxu0 0.0
    %243 = vmatprep.subr.mxu0 0.0
    %244 = vmatpush1.msra.mxu0 0.0
    %245 = vmatprep.subr.mxu0 0.0
    %246 = vmatpush1.msra.mxu0 0.0
    %247 = vmatprep.subr.mxu0 0.0
    %248 = vmatpush1.msra.mxu0 0.0
    %249 = vmatprep.subr.mxu0 0.0
    %250 = vmatpush1.msra.mxu0 0.0
    %251 = vmatprep.subr.mxu0 0.0
    %252 = vmatpush1.msra.mxu0 0.0
    %253 = vmatprep.subr.mxu0 0.0
    %254 = vmatpush1.msra.mxu0 0.0
    %255 = vmatprep.subr.mxu0 0.0
    %256 = vmatpush1.msra.mxu0 0.0
    %257 = vmatprep.subr.mxu0 0.0
    %258 = vmatpush1.msra.mxu0 0.0
    %259 = vmatprep.subr.mxu0 0.0
    %260 = vmatpush1.msra.mxu0 0.0
    %261 = vmatprep.subr.mxu0 0.0
    %262 = vmatpush1.msra.mxu0 0.0
    %263 = vmatprep.subr.mxu0 0.0
    %264 = vmatpush1.msra.mxu0 0.0
    %265 = vmatprep.subr.mxu0 0.0
    %266 = vmatpush1.msra.mxu0 0.0
    %267 = vmatprep.subr.mxu0 0.0
    %268 = vmatpush1.msra.mxu0 0.0
    %269 = vmatprep.subr.mxu0 0.0
    %270 = vmatpush1.msra.mxu0 0.0
    %271 = vmatprep.mubr.f32.mxu0 0.0
    %272 = vmatmul.mubr.f32.gmra.mrb[0].mxu0 %v205
    %v273 = vpop.f32.mrb[0].mxu0
    %v274 = vadd.f32 %v202, %v273
    %v275 = vpop.f32.mrb[0].mxu0
    %276 = vdwg.mxu0
    %v277 = vlaneseq
    %v278 = vshrl.u32 %v277, 7
    %v280 = vrot.slane %v274, 1
    %v282 = vsub.f32 %v274, %v280
    %v283 = vand.u32 2147483647, %v282
    %v284 = vsub.f32 0.0, %v283
    %v285 = vmul.f32 %v284, 1.442695
    %v286 = vpow.pop %v285
    %v287 = vadd.f32 %v286, 1.0
    %v288 = vrcp.pop %v287
    %v289 = vmul.f32 1.0, %v288
    %vm290 = vcmp.ge.f32.partialorder %v282, 0.0
    %v291 = vsub.f32 1.0, %v289
    %v292 = vsel %vm290, %v289, %v291
    %vm293 = vcmp.eq.s32.totalorder %v278, 0
    %vm294 = vcmp.eq.s32.totalorder %v278, 1
    %v295 = vsub.f32 1.0, %v292
    %v296 = vlaneseq
    %v297 = vshrl.u32 %v296, 7
    %v298 = vsub.s32 0, %v297
    %v299 = vrot.slane %v295, %v298
    %v300 = vsel %vm294, %v299, %v274
    %v301 = vlaneseq
    %v302 = vshrl.u32 %v301, 7
    %v303 = vsub.s32 0, %v302
    %v304 = vrot.slane %v292, %v303
    %v305 = vsel %vm293, %v304, %v300
    %306 = vst [vmem:[#allocation2] sm:$0x7] %v305
    // Predicated region
    $region14: #{tpu_custom_call.1} parent=1 // pred_check
      _
    $region15: #{tpu_custom_call.1} parent=1 // pred_check_branch
      %308 = sbr.rel (0) target = $region17
    $region16: #{tpu_custom_call.1} parent=1 // pred_region
      %s310 = ssub.s32 64, 64
      %311 = vsyncadd [#allocation3], %s310
      %s313 = sshll.u32 [#allocation2], 4
      %s314 = int_to_ptr.vmem [resolvable:$true] %s313
      %316 = dma.vmem_to_hbm [thread:$0]  %s314, 64, %s3, [#allocation3]
    $region17: #{tpu_custom_call.1} parent=1 // pred_fallthru
      _
    // Predicated region
    $region18: #{tpu_custom_call.1} parent=1 // pred_check
      _
    $region19: #{tpu_custom_call.1} parent=1 // pred_check_branch
      %318 = sbr.rel (0) target = $region21
    $region20: #{tpu_custom_call.1} parent=1 // pred_region
      %319 = dma.done [#allocation3], 64
    $region21: #{tpu_custom_call.1} parent=1 // pred_fallthru
      _
    %320 = vsyncpa [#allocation3], 1

</llo_original>
